<compile_context>
chip_gen: v5e
topology: v5e:2x2
jax: 0.10.0
libtpu: 0.0.40
codegen_flags: <defaults>
</compile_context>

<pallas_src>
import functools

import jax
import jax.numpy as jnp
from jax.experimental import pallas as pl
from jax.experimental.pallas import tpu as pltpu


def _round_up(x, m):
    return ((x + m - 1) // m) * m


def _cdiv(a, b):
    return (a + b - 1) // b


def mtlr_kernel(x_ref, w_ref, b_ref, out_ref):
    # Single MXU matmul with f32 accumulation:
    #   (b_tile, D_in) @ (D_in, n_pad) + (1, n_pad)
    acc = jnp.dot(x_ref[...], w_ref[...], preferred_element_type=jnp.float32)
    out_ref[...] = (acc + b_ref[...]).astype(out_ref.dtype)


@functools.partial(jax.jit, static_argnames=("compute_dtype",))
def mtlr_forward(x, w, b, *, compute_dtype=jnp.bfloat16):
    """MTLRNN forward.

    Args:
      x: (B, D_in) input features.
      w: (D_in, N) fc weight, pre-transposed (PyTorch stores (N, D_in)).
      b: (N,) fc bias, N = num_cat_bins - 1.
    Returns:
      (B, N) float32: reverse cumulative sum along dim 1 of (x @ w + b).
    """
    B, D_in = x.shape
    N = w.shape[1]

    # ---- Host-side fold: cumsum_reverse is linear -> fold into W and b. ----
    w_fold = jnp.cumsum(w.astype(jnp.float32)[:, ::-1], axis=1)[:, ::-1]
    b_fold = jnp.cumsum(b.astype(jnp.float32)[::-1])[::-1]

    # ---- Lane-dense padding of the feature axis only (tiny: D_in x n_pad). ----
    n_pad = _round_up(N, 128)
    w_p = jnp.zeros((D_in, n_pad), compute_dtype).at[:, :N].set(
        w_fold.astype(compute_dtype))
    b_p = jnp.zeros((1, n_pad), jnp.float32).at[0, :N].set(b_fold)

    # Stream x in the compute dtype (bf16); no row padding / extra HBM copy.
    x_c = x.astype(compute_dtype)
    x_itemsize = jnp.dtype(compute_dtype).itemsize
    out_itemsize = 4

    # ---- Batch tile: big enough that the x-block DMA is >= ~512 KiB. ----
    target_block_bytes = 1 << 19
    tile_cap = 4096
    tile_b = max(256, _round_up(target_block_bytes // max(D_in * x_itemsize, 1), 8))
    tile_b = min(tile_b, tile_cap)
    if B <= tile_b:
        # Split into (up to) two blocks so v7x's second TensorCore gets work.
        b_tile = min(_round_up(max(_cdiv(B, 2), 1), 8), _round_up(B, 8))
    else:
        b_tile = tile_b
    grid = (_cdiv(B, b_tile),)

    # ---- Scheduler hints consistent with the folded, mixed-dtype data path. ----
    flops = 2 * B * D_in * n_pad
    bytes_accessed = (B * D_in * x_itemsize          # x stream
                      + D_in * n_pad * x_itemsize    # folded weight
                      + n_pad * 4                    # folded bias
                      + B * n_pad * out_itemsize)    # output

    # Only raise the scoped-VMEM limit if the (double-buffered) blocks need it.
    vmem_bytes = (2 * b_tile * D_in * x_itemsize
                  + 2 * D_in * n_pad * x_itemsize
                  + 2 * n_pad * 4
                  + 2 * b_tile * n_pad * out_itemsize)
    vmem_limit = None
    if vmem_bytes > 30 * 1024 * 1024:
        vmem_limit = int(min(vmem_bytes + (4 << 20), 96 * 1024 * 1024))

    out = pl.pallas_call(
        mtlr_kernel,
        out_shape=jax.ShapeDtypeStruct((B, n_pad), jnp.float32),
        grid_spec=pltpu.PrefetchScalarGridSpec(
            num_scalar_prefetch=0,
            grid=grid,
            in_specs=[
                pl.BlockSpec((b_tile, D_in), lambda i: (i, 0)),
                # Constant index maps: folded weight / bias stay resident in
                # VMEM; not re-DMA'd across batch blocks.
                pl.BlockSpec((D_in, n_pad), lambda i: (0, 0)),
                pl.BlockSpec((1, n_pad), lambda i: (0, 0)),
            ],
            out_specs=pl.BlockSpec((b_tile, n_pad), lambda i: (i, 0)),
        ),
        compiler_params=pltpu.CompilerParams(
            dimension_semantics=("parallel",),
            vmem_limit_bytes=vmem_limit,
        ),
        cost_estimate=pl.CostEstimate(
            flops=flops, transcendentals=0, bytes_accessed=bytes_accessed),
    )(x_c, w_p, b_p)
    return out[:, :N]


def reference_forward(x, w, b):
    """Pure-JAX f32 reference of MTLRNN.forward (w pre-transposed to (D_in, N))."""
    preds = jnp.dot(x, w, precision=jax.lax.Precision.HIGHEST) + b
    # util.cumsum_reverse(preds, dim=1): out[:, j] = sum_{k >= j} preds[:, k]
    return jnp.cumsum(preds[:, ::-1], axis=1)[:, ::-1]


if __name__ == "__main__":
    B, D_in, NUM_CAT_BINS = 8, 32, 20
    N = NUM_CAT_BINS - 1

    key = jax.random.PRNGKey(0)
    kx, kw, kb = jax.random.split(key, 3)
    x = jax.random.normal(kx, (B, D_in), jnp.float32)
    # nn.Linear(D_in, N) init, weight stored pre-transposed as (D_in, N).
    scale = 1.0 / jnp.sqrt(D_in)
    w = jax.random.uniform(kw, (D_in, N), jnp.float32, -scale, scale)
    b = jax.random.uniform(kb, (N,), jnp.float32, -scale, scale)

    out = jax.block_until_ready(mtlr_forward(x, w, b))
    assert out.shape == (B, N), out.shape

    # Semantic check vs. the full-f32 reference (tolerance accounts for the
    # bf16 streaming of x / W').
    ref = reference_forward(x, w, b)
    assert jnp.allclose(out, ref, atol=5e-2, rtol=5e-2), (
        float(jnp.max(jnp.abs(out - ref))))

    # Tight check vs. a reference that sees the exact same bf16 operands.
    w_fold = jnp.cumsum(w[:, ::-1], axis=1)[:, ::-1]
    b_fold = jnp.cumsum(b[::-1])[::-1]
    ref_bf16 = jnp.dot(x.astype(jnp.bfloat16), w_fold.astype(jnp.bfloat16),
                       preferred_element_type=jnp.float32) + b_fold
    assert jnp.allclose(out, ref_bf16, atol=1e-4, rtol=1e-4), (
        float(jnp.max(jnp.abs(out - ref_bf16))))

    print("KERNEL_OK")
</pallas_src>

<mosaic_0001>
module attributes {stable_mosaic.version = 11 : i64} {
  func.func @mtlr_kernel(%arg0: i32, %arg1: memref<8x32xbf16, #tpu.memory_space<vmem>>, %arg2: memref<32x128xbf16, #tpu.memory_space<vmem>>, %arg3: memref<1x128xf32, #tpu.memory_space<vmem>>, %arg4: memref<8x128xf32, #tpu.memory_space<vmem>>) attributes {dimension_semantics = [#tpu.dimension_semantics<parallel>], iteration_bounds = array<i64: 1>, scalar_prefetch = 0 : i64, scratch_operands = 0 : i64, tpu.core_type = #tpu.core_type<tc>, window_params = [{transform_indices = @transform_0, window_bounds = array<i64: 8, 32>}, {pipeline_mode = #tpu.pipeline_mode<synchronous>, transform_indices = @transform_1, window_bounds = array<i64: 32, 128>}, {pipeline_mode = #tpu.pipeline_mode<synchronous>, transform_indices = @transform_2, window_bounds = array<i64: 1, 128>}, {transform_indices = @transform_3, window_bounds = array<i64: 8, 128>}]} {
    %c0 = arith.constant 0 : index
    %c0_0 = arith.constant 0 : index
    %0 = vector.load %arg1[%c0, %c0_0] : memref<8x32xbf16, #tpu.memory_space<vmem>>, vector<8x32xbf16>
    %c0_1 = arith.constant 0 : index
    %c0_2 = arith.constant 0 : index
    %1 = vector.load %arg2[%c0_1, %c0_2] : memref<32x128xbf16, #tpu.memory_space<vmem>>, vector<32x128xbf16>
    %cst = arith.constant dense<0.000000e+00> : vector<8x128xf32>
    %2 = tpu.matmul %0, %1, %cst {dimension_numbers = #tpu.dot_dimension_numbers<[1], [0], [0], [1], [0, 0, 1, 1], [], []>} : vector<8x32xbf16>, vector<32x128xbf16>, vector<8x128xf32> -> vector<8x128xf32>
    %c0_3 = arith.constant 0 : index
    %c0_4 = arith.constant 0 : index
    %3 = vector.load %arg3[%c0_3, %c0_4] : memref<1x128xf32, #tpu.memory_space<vmem>>, vector<1x128xf32>
    %4 = vector.broadcast %3 : vector<1x128xf32> to vector<8x128xf32>
    %5 = arith.addf %2, %4 : vector<8x128xf32>
    %c0_5 = arith.constant 0 : index
    %c0_6 = arith.constant 0 : index
    %6 = vector.load %arg4[%c0_5, %c0_6] : memref<8x128xf32, #tpu.memory_space<vmem>>, vector<8x128xf32>
    tpu.vector_store %arg4[%c0_5, %c0_6], %5 {strides = array<i32>} : memref<8x128xf32, #tpu.memory_space<vmem>>, vector<8x128xf32>,
    return
  }
  func.func @transform_0(%arg0: i32) -> (i32, i32) {
    %c0_i32 = arith.constant 0 : i32
    %c0_i32_0 = arith.constant 0 : i32
    return %arg0, %c0_i32 : i32, i32
  }
  func.func @transform_1(%arg0: i32) -> (i32, i32) {
    %c0_i32 = arith.constant 0 : i32
    %c0_i32_0 = arith.constant 0 : i32
    %c0_i32_1 = arith.constant 0 : i32
    return %c0_i32, %c0_i32_0 : i32, i32
  }
  func.func @transform_2(%arg0: i32) -> (i32, i32) {
    %c0_i32 = arith.constant 0 : i32
    %c0_i32_0 = arith.constant 0 : i32
    %c0_i32_1 = arith.constant 0 : i32
    return %c0_i32, %c0_i32_0 : i32, i32
  }
  func.func @transform_3(%arg0: i32) -> (i32, i32) {
    %c0_i32 = arith.constant 0 : i32
    %c0_i32_0 = arith.constant 0 : i32
    return %arg0, %c0_i32 : i32, i32
  }
}

</mosaic_0001>

<llo_original>
// kernel: mtlr_forward.1
$region0: #{mtlr_forward.1}
  #allocation0 [shape = 'u32[]', space=smem, size = 0x4, offset = 0x4, fixed_abs, tag = 'smem constant byte address 0x4 - core index']
  #allocation1 [shape = 'u32[72,128]{1,0:T(1,128)}', space=vmem, size = 0x9000, scoped, tag = 'internal scratch']
  %s0 = inlined_call_operand.vmem [shape: bf16[8,32], index: 0, kind: input, shape index: {}]
  %s1 = inlined_call_operand.vmem [shape: bf16[32,128], index: 1, kind: input, shape index: {}]
  %s2 = inlined_call_operand.vmem [shape: f32[1,128], index: 2, kind: input, shape index: {}]
  %s3 = inlined_call_operand.hbm [shape: f32[8,128], index: 3, kind: output, shape index: {}]
  %s4 = sld [smem:[#allocation0]]
  $region22: #{mtlr_forward.1} parent=0
    _
  %s6 = ssub.s32 1, %s4
  %s7 = scalar_select 0, %s6, %s4
  $region1: #{mtlr_forward.1} parent=0
    #allocation2 [shape = 'u8[4096]{0}', space=vmem, size = 0x1000, scoped, tag = 'output window, operand 0, single buffered']
    #allocation3 [shape = 's32[1]{0}', space=sflag, size = 0x4, scoped, tag = 'scoped memory for mtlr_forward.1']
    %8 = vsyncpa [#allocation3], 0
    // Predicated region
    $region2: #{mtlr_forward.1} parent=1 // pred_check
      _
    $region3: #{mtlr_forward.1} parent=1 // pred_check_branch
      %10 = sbr.rel (0) target = $region5
    $region4: #{mtlr_forward.1} parent=1 // pred_region
      _
    $region5: #{mtlr_forward.1} parent=1 // pred_fallthru
      _
    // Predicated region
    $region6: #{mtlr_forward.1} parent=1 // pred_check
      _
    $region7: #{mtlr_forward.1} parent=1 // pred_check_branch
      %12 = sbr.rel (0) target = $region9
    $region8: #{mtlr_forward.1} parent=1 // pred_region
      _
    $region9: #{mtlr_forward.1} parent=1 // pred_fallthru
      _
    // Predicated region
    $region10: #{mtlr_forward.1} parent=1 // pred_check
      _
    $region11: #{mtlr_forward.1} parent=1 // pred_check_branch
      %14 = sbr.rel (0) target = $region13
    $region12: #{mtlr_forward.1} parent=1 // pred_region
      _
    $region13: #{mtlr_forward.1} parent=1 // pred_fallthru
      _
    %v16 = vld [vmem:[%s0] sm:$0xf]
    %v17 = vld [vmem:[%s1] sm:$0xf]
    %v18 = vld [vmem:[%s1 + $0x4] sm:$0xf]
    %v19 = vld [vmem:[%s1 + $0x8] sm:$0xf]
    %v20 = vld [vmem:[%s1 + $0xc] sm:$0xf]
    %v21 = vld [vmem:[%s2] sm:$0x1]
    %v23 = vperm.slane %v21, 0
    %v29 = vunpack.c.l.b16 %v17
    %v30 = vunpack.c.l.b16 %v18
    %v31 = vunpack.c.l.b16 %v19
    %v32 = vunpack.c.l.b16 %v20
    %v33 = vpack.c.b16 %v30, %v29
    %v34 = vpack.c.b16 %v32, %v31
    %vm37 = vcmask 261120
    %v39 = vsel %vm37, %v16, 0
    %41 = vmatpush.bf16.msra.mxu0 0
    %42 = vmatpush.bf16.msra.mxu0 0
    %43 = vmatpush.bf16.msra.mxu0 0
    %44 = vmatpush.bf16.msra.mxu0 0
    %45 = vmatpush.bf16.msra.mxu0 0
    %46 = vmatpush.bf16.msra.mxu0 0
    %47 = vmatpush.bf16.msra.mxu0 %v34
    %48 = vmatpush.bf16.msra.mxu0 %v33
    %49 = vmatmul.bf16.gmra.mxu0 %v39
    %v50 = vpop.f32.mrf.mxu0
    %v51 = vadd.f32 %v23, %v50
    %v52 = vpop.f32.mrf.mxu0
    %53 = vdwg.mxu0
    %54 = vst [vmem:[#allocation2] sm:$0xff] %v51
    // Predicated region
    $region14: #{mtlr_forward.1} parent=1 // pred_check
      _
    $region15: #{mtlr_forward.1} parent=1 // pred_check_branch
      %56 = sbr.rel (0) target = $region17
    $region16: #{mtlr_forward.1} parent=1 // pred_region
      %58 = vsyncadd [#allocation3], 0
      %s60 = sshll.u32 [#allocation2], 4
      %s61 = int_to_ptr.vmem [resolvable:$true] %s60
      %s62 = sshll.u32 %s3, 4
      %s63 = int_to_ptr.hbm [resolvable:$true] %s62
      %65 = dma.vmem_to_hbm [thread:$0]  %s61, 128, %s63, [#allocation3]
    $region17: #{mtlr_forward.1} parent=1 // pred_fallthru
      _
    // Predicated region
    $region18: #{mtlr_forward.1} parent=1 // pred_check
      _
    $region19: #{mtlr_forward.1} parent=1 // pred_check_branch
      %67 = sbr.rel (0) target = $region21
    $region20: #{mtlr_forward.1} parent=1 // pred_region
      %69 = dma.done [#allocation3], 128
    $region21: #{mtlr_forward.1} parent=1 // pred_fallthru
      _
    %70 = vsyncpa [#allocation3], 1

</llo_original>
